<compile_context>
chip_gen: v6e
topology: v6e:2x2x1
jax: 0.10.0
libtpu: 0.0.40
codegen_flags: <defaults>
</compile_context>

<pallas_src>
import jax
import jax.numpy as jnp
from jax.experimental import pallas as pl
from jax.experimental.pallas import tpu as pltpu

BN_EPS = 1e-5
LEAKY_SLOPE = 0.01   # PyTorch nn.LeakyReLU default negative_slope
LANE = 128           # TPU lane width; hidden2 / num_classes padded to this
SUBLANE = 8          # f32 sublane group; batch padded to a multiple of this


def mlp_kernel(x_ref, w1_ref, w23_ref, b_ref, out_ref):
    """Fused MLP forward. Everything lives in VMEM (small shapes, grid-less)."""
    # Single cast of activations to bf16 for the MXU (weights already bf16).
    x = x_ref[...].astype(jnp.bfloat16)

    # Linear(input_size -> 128): bf16 x bf16 -> f32 accumulate, f32 bias.
    h = jnp.dot(x, w1_ref[...], preferred_element_type=jnp.float32) + b_ref[0:1, :]

    # ReLU (f32 on the VPU).
    h = jnp.maximum(h, 0.0)

    # BatchNorm1d (eval) is folded into w2'/b2' in the wrapper.
    # Dropout(0.5) is identity in eval mode.

    # Linear(128 -> 64); hidden2 padded to 128 lanes (padded cols/bias are 0).
    h = jnp.dot(h.astype(jnp.bfloat16), w23_ref[0],
                preferred_element_type=jnp.float32) + b_ref[1:2, :]

    # LeakyReLU (padded lanes stay exactly 0).
    h = jnp.where(h > 0, h, LEAKY_SLOPE * h)

    # Final Linear(64 -> num_classes), padded to 128 lanes -> lane-dense store.
    out = jnp.dot(h.astype(jnp.bfloat16), w23_ref[1],
                  preferred_element_type=jnp.float32) + b_ref[2:3, :]
    out_ref[...] = out


def prepare_params(params):
    """One-time weight preprocessing: fold BN, pad, pack, cast to bf16."""
    (w1, b1, gamma, beta, rmean, rvar, w2, b2, w3, b3) = params
    hidden1 = w1.shape[1]     # 128 (== LANE for this config)
    hidden2 = w2.shape[1]     # 64
    num_classes = w3.shape[1]

    # Fold BatchNorm1d (eval, running stats) into the second Linear (f32 algebra).
    scale = gamma * jax.lax.rsqrt(rvar + BN_EPS)        # (1, hidden1)
    shift = beta - rmean * scale                        # (1, hidden1)
    w2f = scale.reshape(hidden1, 1) * w2                # (hidden1, hidden2)
    b2f = b2 + shift @ w2                               # (1, hidden2)

    def pad_cols(a, n):
        return jnp.pad(a, ((0, 0), (0, n - a.shape[1])))

    # Pad hidden2 / num_classes to 128 lanes; stack w2'/w3 into one bf16 array.
    w2p = pad_cols(w2f, LANE)                                           # (128, 128)
    w3p = jnp.pad(w3, ((0, LANE - hidden2), (0, LANE - num_classes)))   # (128, 128)
    w23 = jnp.stack([w2p, w3p]).astype(jnp.bfloat16)                    # (2, 128, 128)

    # Pack all biases into a single (3, 128) f32 array.
    b_pack = jnp.concatenate(
        [pad_cols(b1, LANE), pad_cols(b2f, LANE), pad_cols(b3, LANE)],
        axis=0).astype(jnp.float32)                                     # (3, 128)

    w1_bf16 = w1.astype(jnp.bfloat16)                                   # (1024, 128)
    return (w1_bf16, w23, b_pack, num_classes)


def make_forward(prepared):
    """Builds a jitted forward that closes over the prepared (device-resident)
    weights, so constants are prepared once and reused across every call of
    the returned function (per-call re-prep / host round-trips eliminated)."""
    w1, w23, b_pack, num_classes = prepared
    input_size = w1.shape[0]

    vmem = pl.BlockSpec(memory_space=pltpu.MemorySpace.VMEM)

    @jax.jit
    def forward(x):
        """x: (B, C, H, W) float32, NCHW. Returns logits (B, num_classes)."""
        B = x.shape[0]
        x_flat = x.reshape(B, -1)        # == torch.flatten(x, 1) for NCHW
        assert x_flat.shape[1] == input_size

        # Pad batch to a full sublane group -> unmasked output stores,
        # full vregs on activations. Sliced back after the call.
        B_pad = max(SUBLANE, ((B + SUBLANE - 1) // SUBLANE) * SUBLANE)
        if B_pad != B:
            x_flat = jnp.pad(x_flat, ((0, B_pad - B), (0, 0)))

        # Advisory cost hint so XLA can schedule/overlap this tiny call.
        flops = 2 * B_pad * (input_size * LANE + LANE * LANE + LANE * LANE)
        bytes_accessed = (x_flat.size * 4          # x (f32)
                          + w1.size * 2            # w1 (bf16)
                          + w23.size * 2           # w2'/w3 (bf16)
                          + b_pack.size * 4        # biases (f32)
                          + B_pad * LANE * 4)      # output (f32)
        cost = pl.CostEstimate(flops=flops, transcendentals=0,
                               bytes_accessed=bytes_accessed)

        out_padded = pl.pallas_call(
            mlp_kernel,
            out_shape=jax.ShapeDtypeStruct((B_pad, LANE), jnp.float32),
            in_specs=[vmem, vmem, vmem, vmem],
            out_specs=vmem,
            cost_estimate=cost,
        )(x_flat, w1, w23, b_pack)

        return out_padded[:B, :num_classes]

    return forward


def init_params(key, input_size, hidden1, hidden2, num_classes):
    """Deterministic init mimicking PyTorch nn.Linear defaults
    (uniform(-1/sqrt(fan_in), 1/sqrt(fan_in))) and nn.BatchNorm1d defaults.
    Linear weights are stored pre-transposed as (in, out)."""
    def linear(key, fan_in, fan_out):
        kw, kb = jax.random.split(key)
        bound = 1.0 / jnp.sqrt(jnp.float32(fan_in))
        w = jax.random.uniform(kw, (fan_in, fan_out), jnp.float32, -bound, bound)
        b = jax.random.uniform(kb, (1, fan_out), jnp.float32, -bound, bound)
        return w, b

    k1, k2, k3 = jax.random.split(key, 3)
    w1, b1 = linear(k1, input_size, hidden1)
    w2, b2 = linear(k2, hidden1, hidden2)
    w3, b3 = linear(k3, hidden2, num_classes)

    gamma = jnp.ones((1, hidden1), jnp.float32)
    beta = jnp.zeros((1, hidden1), jnp.float32)
    rmean = jnp.zeros((1, hidden1), jnp.float32)
    rvar = jnp.ones((1, hidden1), jnp.float32)

    return (w1, b1, gamma, beta, rmean, rvar, w2, b2, w3, b3)


def reference_forward_f32(x, params):
    """Pure-f32 JAX reference of the original module semantics (BN unfolded)."""
    (w1, b1, gamma, beta, rmean, rvar, w2, b2, w3, b3) = params
    h = x.reshape(x.shape[0], -1)
    h = h @ w1 + b1
    h = jnp.maximum(h, 0.0)
    h = (h - rmean) * jax.lax.rsqrt(rvar + BN_EPS) * gamma + beta
    h = h @ w2 + b2
    h = jnp.where(h > 0, h, LEAKY_SLOPE * h)
    return h @ w3 + b3


def reference_forward_matched(x, prepared):
    """Pure-JAX reference using the exact same bf16 weights / folded BN as the
    kernel (isolates Pallas correctness from quantization error)."""
    w1, w23, b_pack, num_classes = prepared
    h = x.reshape(x.shape[0], -1).astype(jnp.bfloat16)
    h = jnp.dot(h, w1, preferred_element_type=jnp.float32) + b_pack[0:1]
    h = jnp.maximum(h, 0.0)
    h = jnp.dot(h.astype(jnp.bfloat16), w23[0],
                preferred_element_type=jnp.float32) + b_pack[1:2]
    h = jnp.where(h > 0, h, LEAKY_SLOPE * h)
    out = jnp.dot(h.astype(jnp.bfloat16), w23[1],
                  preferred_element_type=jnp.float32) + b_pack[2:3]
    return out[:, :num_classes]


if __name__ == "__main__":
    B, C, H, W = 2, 4, 16, 16
    input_size = C * H * W          # 1024
    hidden1, hidden2 = 128, 64
    num_classes = 10

    key = jax.random.PRNGKey(0)
    kx, kp = jax.random.split(key)
    x = jax.random.normal(kx, (B, C, H, W), jnp.float32)
    params = init_params(kp, input_size, hidden1, hidden2, num_classes)

    prepared = prepare_params(params)     # one-time weight prep
    forward = make_forward(prepared)      # weights resident across calls

    # Mini "serving loop": repeated calls reuse the same compiled executable
    # and the same device-resident prepared weights (no per-call re-prep).
    out = forward(x)
    for _ in range(3):
        out = forward(x)
    out = jax.block_until_ready(out)
    assert out.shape == (B, num_classes)

    # Exact-math check against a matched (bf16-weight, folded-BN) reference.
    ref_matched = reference_forward_matched(x, prepared)
    assert jnp.allclose(out, ref_matched, atol=1e-3, rtol=1e-3), (
        f"max diff vs matched ref: {jnp.max(jnp.abs(out - ref_matched))}")

    # Fidelity check against the full-f32 original-semantics reference
    # (difference is only the bf16 weight/activation quantization).
    ref_f32 = reference_forward_f32(x, params)
    assert jnp.allclose(out, ref_f32, atol=0.1), (
        f"max diff vs f32 ref: {jnp.max(jnp.abs(out - ref_f32))}")

    print("KERNEL_OK")
</pallas_src>

<mosaic_0001>
module attributes {stable_mosaic.version = 11 : i64} {
  func.func @mlp_kernel(%arg0: memref<8x1024xf32, #tpu.memory_space<vmem>>, %arg1: memref<1024x128xbf16, #tpu.memory_space<vmem>>, %arg2: memref<2x128x128xbf16, #tpu.memory_space<vmem>>, %arg3: memref<3x128xf32, #tpu.memory_space<vmem>>, %arg4: memref<8x128xf32, #tpu.memory_space<vmem>>) attributes {dimension_semantics = [], scalar_prefetch = 0 : i64, scratch_operands = 0 : i64, tpu.core_type = #tpu.core_type<tc>} {
    %c0 = arith.constant 0 : index
    %c0_0 = arith.constant 0 : index
    %0 = vector.load %arg0[%c0, %c0_0] : memref<8x1024xf32, #tpu.memory_space<vmem>>, vector<8x1024xf32>
    %1 = arith.truncf %0 : vector<8x1024xf32> to vector<8x1024xbf16>
    %c0_1 = arith.constant 0 : index
    %c0_2 = arith.constant 0 : index
    %2 = vector.load %arg1[%c0_1, %c0_2] : memref<1024x128xbf16, #tpu.memory_space<vmem>>, vector<1024x128xbf16>
    %cst = arith.constant dense<0.000000e+00> : vector<8x128xf32>
    %3 = tpu.matmul %1, %2, %cst {dimension_numbers = #tpu.dot_dimension_numbers<[1], [0], [0], [1], [0, 0, 1, 1], [], []>} : vector<8x1024xbf16>, vector<1024x128xbf16>, vector<8x128xf32> -> vector<8x128xf32>
    %c0_3 = arith.constant 0 : index
    %c0_4 = arith.constant 0 : index
    %4 = vector.load %arg3[%c0_3, %c0_4] : memref<3x128xf32, #tpu.memory_space<vmem>>, vector<1x128xf32>
    %5 = vector.broadcast %4 : vector<1x128xf32> to vector<8x128xf32>
    %6 = arith.addf %3, %5 : vector<8x128xf32>
    %cst_5 = arith.constant 0.000000e+00 : f32
    %7 = vector.broadcast %cst_5 : f32 to vector<8x128xf32>
    %8 = arith.maximumf %6, %7 : vector<8x128xf32>
    %9 = arith.truncf %8 : vector<8x128xf32> to vector<8x128xbf16>
    %c0_6 = arith.constant 0 : index
    %c0_7 = arith.constant 0 : index
    %c0_8 = arith.constant 0 : index
    %10 = vector.load %arg2[%c0_6, %c0_7, %c0_8] : memref<2x128x128xbf16, #tpu.memory_space<vmem>>, vector<1x128x128xbf16>
    %11 = vector.shape_cast %10 : vector<1x128x128xbf16> to vector<128x128xbf16>
    %cst_9 = arith.constant dense<0.000000e+00> : vector<8x128xf32>
    %12 = tpu.matmul %9, %11, %cst_9 {dimension_numbers = #tpu.dot_dimension_numbers<[1], [0], [0], [1], [0, 0, 1, 1], [], []>} : vector<8x128xbf16>, vector<128x128xbf16>, vector<8x128xf32> -> vector<8x128xf32>
    %c1 = arith.constant 1 : index
    %c0_10 = arith.constant 0 : index
    %13 = vector.load %arg3[%c1, %c0_10] : memref<3x128xf32, #tpu.memory_space<vmem>>, vector<1x128xf32>
    %14 = vector.broadcast %13 : vector<1x128xf32> to vector<8x128xf32>
    %15 = arith.addf %12, %14 : vector<8x128xf32>
    %cst_11 = arith.constant 0.000000e+00 : f32
    %16 = vector.broadcast %cst_11 : f32 to vector<8x128xf32>
    %17 = arith.cmpf ogt, %15, %16 : vector<8x128xf32>
    %cst_12 = arith.constant 0.00999999977 : f32
    %18 = vector.broadcast %cst_12 : f32 to vector<8x128xf32>
    %19 = arith.mulf %18, %15 : vector<8x128xf32>
    %20 = arith.select %17, %15, %19 : vector<8x128xi1>, vector<8x128xf32>
    %21 = arith.truncf %20 : vector<8x128xf32> to vector<8x128xbf16>
    %c1_13 = arith.constant 1 : index
    %c0_14 = arith.constant 0 : index
    %c0_15 = arith.constant 0 : index
    %22 = vector.load %arg2[%c1_13, %c0_14, %c0_15] : memref<2x128x128xbf16, #tpu.memory_space<vmem>>, vector<1x128x128xbf16>
    %23 = vector.shape_cast %22 : vector<1x128x128xbf16> to vector<128x128xbf16>
    %cst_16 = arith.constant dense<0.000000e+00> : vector<8x128xf32>
    %24 = tpu.matmul %21, %23, %cst_16 {dimension_numbers = #tpu.dot_dimension_numbers<[1], [0], [0], [1], [0, 0, 1, 1], [], []>} : vector<8x128xbf16>, vector<128x128xbf16>, vector<8x128xf32> -> vector<8x128xf32>
    %c2 = arith.constant 2 : index
    %c0_17 = arith.constant 0 : index
    %25 = vector.load %arg3[%c2, %c0_17] : memref<3x128xf32, #tpu.memory_space<vmem>>, vector<1x128xf32>
    %26 = vector.broadcast %25 : vector<1x128xf32> to vector<8x128xf32>
    %27 = arith.addf %24, %26 : vector<8x128xf32>
    %c0_18 = arith.constant 0 : index
    %c0_19 = arith.constant 0 : index
    %28 = vector.load %arg4[%c0_18, %c0_19] : memref<8x128xf32, #tpu.memory_space<vmem>>, vector<8x128xf32>
    tpu.vector_store %arg4[%c0_18, %c0_19], %27 {strides = array<i32>} : memref<8x128xf32, #tpu.memory_space<vmem>>, vector<8x128xf32>,
    return
  }
}

</mosaic_0001>

<llo_original>
// kernel: forward.1
$region0: #{forward.1}
  #allocation0 [shape = 'u32[]', space=smem, size = 0x4, offset = 0x4, fixed_abs, tag = 'smem constant byte address 0x4 - core index']
  #allocation1 [shape = 'u32[144,128]{1,0:T(1,128)}', space=vmem, size = 0x12000, scoped, tag = 'internal scratch']
  %s0 = inlined_call_operand.vmem [shape: f32[8,1024], index: 0, kind: input, shape index: {}]
  %s1 = inlined_call_operand.hbm [shape: bf16[1024,128], index: 1, kind: input, shape index: {}]
  %s2 = inlined_call_operand.vmem [shape: bf16[2,128,128], index: 2, kind: input, shape index: {}]
  %s3 = inlined_call_operand.vmem [shape: f32[3,128], index: 3, kind: input, shape index: {}]
  %s4 = inlined_call_operand.vmem [shape: f32[8,128], index: 4, kind: output, shape index: {}]
  %s5 = sld [smem:[#allocation0]]
  $region30: #{forward.1} parent=0
    _
  %s7 = ssub.s32 1, %s5
  %s8 = scalar_select 0, %s7, %s5
  $region1: #{forward.1} parent=0
    #allocation2 [shape = 'u8[262144]{0}', space=vmem, size = 0x40000, scoped, tag = 'input window, operand 1, single buffered']
    #allocation3 [shape = 's32[1]{0}', space=sflag, size = 0x4, scoped, tag = 'scoped memory for forward.1']
    %9 = vsyncpa [#allocation3], 0
    // Predicated region
    $region2: #{forward.1} parent=1 // pred_check
      _
    $region3: #{forward.1} parent=1 // pred_check_branch
      %11 = sbr.rel (0) target = $region5
    $region4: #{forward.1} parent=1 // pred_region
      _
    $region5: #{forward.1} parent=1 // pred_fallthru
      _
    // Predicated region
    $region6: #{forward.1} parent=1 // pred_check
      _
    $region7: #{forward.1} parent=1 // pred_check_branch
      %13 = sbr.rel (0) target = $region9
    $region8: #{forward.1} parent=1 // pred_region
      %s15 = ssub.s32 8192, 8192
      %16 = vsyncadd [#allocation3], %s15
      %s17 = sshll.u32 [#allocation2], 4
      %s18 = int_to_ptr.vmem [resolvable:$true] %s17
      %23 = dma.hbm_to_vmem [thread:$0]  %s1, 8192, %s18, [#allocation3], 64, 64, 4
    $region9: #{forward.1} parent=1 // pred_fallthru
      _
    // Predicated region
    $region10: #{forward.1} parent=1 // pred_check
      _
    $region11: #{forward.1} parent=1 // pred_check_branch
      %25 = sbr.rel (0) target = $region13
    $region12: #{forward.1} parent=1 // pred_region
      _
    $region13: #{forward.1} parent=1 // pred_fallthru
      _
    // Predicated region
    $region14: #{forward.1} parent=1 // pred_check
      _
    $region15: #{forward.1} parent=1 // pred_check_branch
      %27 = sbr.rel (0) target = $region17
    $region16: #{forward.1} parent=1 // pred_region
      _
    $region17: #{forward.1} parent=1 // pred_fallthru
      _
    // Predicated region
    $region18: #{forward.1} parent=1 // pred_check
      _
    $region19: #{forward.1} parent=1 // pred_check_branch
      %29 = sbr.rel (0) target = $region21
    $region20: #{forward.1} parent=1 // pred_region
      %30 = dma.done [#allocation3], 8192
    $region21: #{forward.1} parent=1 // pred_fallthru
      _
    %v32 = vld [vmem:[%s0] sm:$0xff]
    %v33 = vld [vmem:[%s0 + $0x8] sm:$0xff]
    %v34 = vld [vmem:[%s0 + $0x10] sm:$0xff]
    %v35 = vld [vmem:[%s0 + $0x18] sm:$0xff]
    %v36 = vld [vmem:[%s0 + $0x20] sm:$0xff]
    %v37 = vld [vmem:[%s0 + $0x28] sm:$0xff]
    %v38 = vld [vmem:[%s0 + $0x30] sm:$0xff]
    %v39 = vld [vmem:[%s0 + $0x38] sm:$0xff]
    %v40 = vpack.c.bf16 %v32, %v32
    %v41 = vpack.c.bf16 %v33, %v33
    %v42 = vpack.c.bf16 %v34, %v34
    %v43 = vpack.c.bf16 %v35, %v35
    %v44 = vpack.c.bf16 %v36, %v36
    %v45 = vpack.c.bf16 %v37, %v37
    %v46 = vpack.c.bf16 %v38, %v38
    %v47 = vpack.c.bf16 %v39, %v39
    %v48 = vld [vmem:[#allocation2] sm:$0xf]
    %v49 = vld [vmem:[#allocation2 + $0x4] sm:$0xf]
    %v50 = vld [vmem:[#allocation2 + $0x8] sm:$0xf]
    %v51 = vld [vmem:[#allocation2 + $0xc] sm:$0xf]
    %v52 = vld [vmem:[#allocation2 + $0x10] sm:$0xf]
    %v53 = vld [vmem:[#allocation2 + $0x14] sm:$0xf]
    %v54 = vld [vmem:[#allocation2 + $0x18] sm:$0xf]
    %v55 = vld [vmem:[#allocation2 + $0x1c] sm:$0xf]
    %v56 = vld [vmem:[#allocation2 + $0x20] sm:$0xf]
    %v57 = vld [vmem:[#allocation2 + $0x24] sm:$0xf]
    %v58 = vld [vmem:[#allocation2 + $0x28] sm:$0xf]
    %v59 = vld [vmem:[#allocation2 + $0x2c] sm:$0xf]
    %v60 = vld [vmem:[#allocation2 + $0x30] sm:$0xf]
    %v61 = vld [vmem:[#allocation2 + $0x34] sm:$0xf]
    %v62 = vld [vmem:[#allocation2 + $0x38] sm:$0xf]
    %v63 = vld [vmem:[#allocation2 + $0x3c] sm:$0xf]
    %v64 = vld [vmem:[#allocation2 + $0x40] sm:$0xf]
    %v65 = vld [vmem:[#allocation2 + $0x44] sm:$0xf]
    %v66 = vld [vmem:[#allocation2 + $0x48] sm:$0xf]
    %v67 = vld [vmem:[#allocation2 + $0x4c] sm:$0xf]
    %v68 = vld [vmem:[#allocation2 + $0x50] sm:$0xf]
    %v69 = vld [vmem:[#allocation2 + $0x54] sm:$0xf]
    %v70 = vld [vmem:[#allocation2 + $0x58] sm:$0xf]
    %v71 = vld [vmem:[#allocation2 + $0x5c] sm:$0xf]
    %v72 = vld [vmem:[#allocation2 + $0x60] sm:$0xf]
    %v73 = vld [vmem:[#allocation2 + $0x64] sm:$0xf]
    %v74 = vld [vmem:[#allocation2 + $0x68] sm:$0xf]
    %v75 = vld [vmem:[#allocation2 + $0x6c] sm:$0xf]
    %v76 = vld [vmem:[#allocation2 + $0x70] sm:$0xf]
    %v77 = vld [vmem:[#allocation2 + $0x74] sm:$0xf]
    %v78 = vld [vmem:[#allocation2 + $0x78] sm:$0xf]
    %v79 = vld [vmem:[#allocation2 + $0x7c] sm:$0xf]
    %v80 = vld [vmem:[#allocation2 + $0x80] sm:$0xf]
    %v81 = vld [vmem:[#allocation2 + $0x84] sm:$0xf]
    %v82 = vld [vmem:[#allocation2 + $0x88] sm:$0xf]
    %v83 = vld [vmem:[#allocation2 + $0x8c] sm:$0xf]
    %v84 = vld [vmem:[#allocation2 + $0x90] sm:$0xf]
    %v85 = vld [vmem:[#allocation2 + $0x94] sm:$0xf]
    %v86 = vld [vmem:[#allocation2 + $0x98] sm:$0xf]
    %v87 = vld [vmem:[#allocation2 + $0x9c] sm:$0xf]
    %v88 = vld [vmem:[#allocation2 + $0xa0] sm:$0xf]
    %v89 = vld [vmem:[#allocation2 + $0xa4] sm:$0xf]
    %v90 = vld [vmem:[#allocation2 + $0xa8] sm:$0xf]
    %v91 = vld [vmem:[#allocation2 + $0xac] sm:$0xf]
    %v92 = vld [vmem:[#allocation2 + $0xb0] sm:$0xf]
    %v93 = vld [vmem:[#allocation2 + $0xb4] sm:$0xf]
    %v94 = vld [vmem:[#allocation2 + $0xb8] sm:$0xf]
    %v95 = vld [vmem:[#allocation2 + $0xbc] sm:$0xf]
    %v96 = vld [vmem:[#allocation2 + $0xc0] sm:$0xf]
    %v97 = vld [vmem:[#allocation2 + $0xc4] sm:$0xf]
    %v98 = vld [vmem:[#allocation2 + $0xc8] sm:$0xf]
    %v99 = vld [vmem:[#allocation2 + $0xcc] sm:$0xf]
    %v100 = vld [vmem:[#allocation2 + $0xd0] sm:$0xf]
    %v101 = vld [vmem:[#allocation2 + $0xd4] sm:$0xf]
    %v102 = vld [vmem:[#allocation2 + $0xd8] sm:$0xf]
    %v103 = vld [vmem:[#allocation2 + $0xdc] sm:$0xf]
    %v104 = vld [vmem:[#allocation2 + $0xe0] sm:$0xf]
    %v105 = vld [vmem:[#allocation2 + $0xe4] sm:$0xf]
    %v106 = vld [vmem:[#allocation2 + $0xe8] sm:$0xf]
    %v107 = vld [vmem:[#allocation2 + $0xec] sm:$0xf]
    %v108 = vld [vmem:[#allocation2 + $0xf0] sm:$0xf]
    %v109 = vld [vmem:[#allocation2 + $0xf4] sm:$0xf]
    %v110 = vld [vmem:[#allocation2 + $0xf8] sm:$0xf]
    %v111 = vld [vmem:[#allocation2 + $0xfc] sm:$0xf]
    %v112 = vld [vmem:[#allocation2 + $0x100] sm:$0xf]
    %v113 = vld [vmem:[#allocation2 + $0x104] sm:$0xf]
    %v114 = vld [vmem:[#allocation2 + $0x108] sm:$0xf]
    %v115 = vld [vmem:[#allocation2 + $0x10c] sm:$0xf]
    %v116 = vld [vmem:[#allocation2 + $0x110] sm:$0xf]
    %v117 = vld [vmem:[#allocation2 + $0x114] sm:$0xf]
    %v118 = vld [vmem:[#allocation2 + $0x118] sm:$0xf]
    %v119 = vld [vmem:[#allocation2 + $0x11c] sm:$0xf]
    %v120 = vld [vmem:[#allocation2 + $0x120] sm:$0xf]
    %v121 = vld [vmem:[#allocation2 + $0x124] sm:$0xf]
    %v122 = vld [vmem:[#allocation2 + $0x128] sm:$0xf]
    %v123 = vld [vmem:[#allocation2 + $0x12c] sm:$0xf]
    %v124 = vld [vmem:[#allocation2 + $0x130] sm:$0xf]
    %v125 = vld [vmem:[#allocation2 + $0x134] sm:$0xf]
    %v126 = vld [vmem:[#allocation2 + $0x138] sm:$0xf]
    %v127 = vld [vmem:[#allocation2 + $0x13c] sm:$0xf]
    %v128 = vld [vmem:[#allocation2 + $0x140] sm:$0xf]
    %v129 = vld [vmem:[#allocation2 + $0x144] sm:$0xf]
    %v130 = vld [vmem:[#allocation2 + $0x148] sm:$0xf]
    %v131 = vld [vmem:[#allocation2 + $0x14c] sm:$0xf]
    %v132 = vld [vmem:[#allocation2 + $0x150] sm:$0xf]
    %v133 = vld [vmem:[#allocation2 + $0x154] sm:$0xf]
    %v134 = vld [vmem:[#allocation2 + $0x158] sm:$0xf]
    %v135 = vld [vmem:[#allocation2 + $0x15c] sm:$0xf]
    %v136 = vld [vmem:[#allocation2 + $0x160] sm:$0xf]
    %v137 = vld [vmem:[#allocation2 + $0x164] sm:$0xf]
    %v138 = vld [vmem:[#allocation2 + $0x168] sm:$0xf]
    %v139 = vld [vmem:[#allocation2 + $0x16c] sm:$0xf]
    %v140 = vld [vmem:[#allocation2 + $0x170] sm:$0xf]
    %v141 = vld [vmem:[#allocation2 + $0x174] sm:$0xf]
    %v142 = vld [vmem:[#allocation2 + $0x178] sm:$0xf]
    %v143 = vld [vmem:[#allocation2 + $0x17c] sm:$0xf]
    %v144 = vld [vmem:[#allocation2 + $0x180] sm:$0xf]
    %v145 = vld [vmem:[#allocation2 + $0x184] sm:$0xf]
    %v146 = vld [vmem:[#allocation2 + $0x188] sm:$0xf]
    %v147 = vld [vmem:[#allocation2 + $0x18c] sm:$0xf]
    %v148 = vld [vmem:[#allocation2 + $0x190] sm:$0xf]
    %v149 = vld [vmem:[#allocation2 + $0x194] sm:$0xf]
    %v150 = vld [vmem:[#allocation2 + $0x198] sm:$0xf]
    %v151 = vld [vmem:[#allocation2 + $0x19c] sm:$0xf]
    %v152 = vld [vmem:[#allocation2 + $0x1a0] sm:$0xf]
    %v153 = vld [vmem:[#allocation2 + $0x1a4] sm:$0xf]
    %v154 = vld [vmem:[#allocation2 + $0x1a8] sm:$0xf]
    %v155 = vld [vmem:[#allocation2 + $0x1ac] sm:$0xf]
    %v156 = vld [vmem:[#allocation2 + $0x1b0] sm:$0xf]
    %v157 = vld [vmem:[#allocation2 + $0x1b4] sm:$0xf]
    %v158 = vld [vmem:[#allocation2 + $0x1b8] sm:$0xf]
    %v159 = vld [vmem:[#allocation2 + $0x1bc] sm:$0xf]
    %v160 = vld [vmem:[#allocation2 + $0x1c0] sm:$0xf]
    %v161 = vld [vmem:[#allocation2 + $0x1c4] sm:$0xf]
    %v162 = vld [vmem:[#allocation2 + $0x1c8] sm:$0xf]
    %v163 = vld [vmem:[#allocation2 + $0x1cc] sm:$0xf]
    %v164 = vld [vmem:[#allocation2 + $0x1d0] sm:$0xf]
    %v165 = vld [vmem:[#allocation2 + $0x1d4] sm:$0xf]
    %v166 = vld [vmem:[#allocation2 + $0x1d8] sm:$0xf]
    %v167 = vld [vmem:[#allocation2 + $0x1dc] sm:$0xf]
    %v168 = vld [vmem:[#allocation2 + $0x1e0] sm:$0xf]
    %v169 = vld [vmem:[#allocation2 + $0x1e4] sm:$0xf]
    %v170 = vld [vmem:[#allocation2 + $0x1e8] sm:$0xf]
    %v171 = vld [vmem:[#allocation2 + $0x1ec] sm:$0xf]
    %v172 = vld [vmem:[#allocation2 + $0x1f0] sm:$0xf]
    %v173 = vld [vmem:[#allocation2 + $0x1f4] sm:$0xf]
    %v174 = vld [vmem:[#allocation2 + $0x1f8] sm:$0xf]
    %v175 = vld [vmem:[#allocation2 + $0x1fc] sm:$0xf]
    %v176 = vld [vmem:[%s3] sm:$0x1]
    %v177 = vlaneseq
    %v178 = vshrl.u32 %v177, 7
    %v179 = vsub.s32 0, %v178
    %v180 = vrot.slane %v176, %v179
    %v309 = vunpack.c.l.b16 %v48
    %v310 = vunpack.c.l.b16 %v49
    %v311 = vunpack.c.l.b16 %v50
    %v312 = vunpack.c.l.b16 %v51
    %v313 = vunpack.c.l.b16 %v52
    %v314 = vunpack.c.l.b16 %v53
    %v315 = vunpack.c.l.b16 %v54
    %v316 = vunpack.c.l.b16 %v55
    %v317 = vunpack.c.l.b16 %v56
    %v318 = vunpack.c.l.b16 %v57
    %v319 = vunpack.c.l.b16 %v58
    %v320 = vunpack.c.l.b16 %v59
    %v321 = vunpack.c.l.b16 %v60
    %v322 = vunpack.c.l.b16 %v61
    %v323 = vunpack.c.l.b16 %v62
    %v324 = vunpack.c.l.b16 %v63
    %v325 = vunpack.c.l.b16 %v64
    %v326 = vunpack.c.l.b16 %v65
    %v327 = vunpack.c.l.b16 %v66
    %v328 = vunpack.c.l.b16 %v67
    %v329 = vunpack.c.l.b16 %v68
    %v330 = vunpack.c.l.b16 %v69
    %v331 = vunpack.c.l.b16 %v70
    %v332 = vunpack.c.l.b16 %v71
    %v333 = vunpack.c.l.b16 %v72
    %v334 = vunpack.c.l.b16 %v73
    %v335 = vunpack.c.l.b16 %v74
    %v336 = vunpack.c.l.b16 %v75
    %v337 = vunpack.c.l.b16 %v76
    %v338 = vunpack.c.l.b16 %v77
    %v339 = vunpack.c.l.b16 %v78
    %v340 = vunpack.c.l.b16 %v79
    %v341 = vunpack.c.l.b16 %v80
    %v342 = vunpack.c.l.b16 %v81
    %v343 = vunpack.c.l.b16 %v82
    %v344 = vunpack.c.l.b16 %v83
    %v345 = vunpack.c.l.b16 %v84
    %v346 = vunpack.c.l.b16 %v85
    %v347 = vunpack.c.l.b16 %v86
    %v348 = vunpack.c.l.b16 %v87
    %v349 = vunpack.c.l.b16 %v88
    %v350 = vunpack.c.l.b16 %v89
    %v351 = vunpack.c.l.b16 %v90
    %v352 = vunpack.c.l.b16 %v91
    %v353 = vunpack.c.l.b16 %v92
    %v354 = vunpack.c.l.b16 %v93
    %v355 = vunpack.c.l.b16 %v94
    %v356 = vunpack.c.l.b16 %v95
    %v357 = vunpack.c.l.b16 %v96
    %v358 = vunpack.c.l.b16 %v97
    %v359 = vunpack.c.l.b16 %v98
    %v360 = vunpack.c.l.b16 %v99
    %v361 = vunpack.c.l.b16 %v100
    %v362 = vunpack.c.l.b16 %v101
    %v363 = vunpack.c.l.b16 %v102
    %v364 = vunpack.c.l.b16 %v103
    %v365 = vunpack.c.l.b16 %v104
    %v366 = vunpack.c.l.b16 %v105
    %v367 = vunpack.c.l.b16 %v106
    %v368 = vunpack.c.l.b16 %v107
    %v369 = vunpack.c.l.b16 %v108
    %v370 = vunpack.c.l.b16 %v109
    %v371 = vunpack.c.l.b16 %v110
    %v372 = vunpack.c.l.b16 %v111
    %v373 = vunpack.c.l.b16 %v112
    %v374 = vunpack.c.l.b16 %v113
    %v375 = vunpack.c.l.b16 %v114
    %v376 = vunpack.c.l.b16 %v115
    %v377 = vunpack.c.l.b16 %v116
    %v378 = vunpack.c.l.b16 %v117
    %v379 = vunpack.c.l.b16 %v118
    %v380 = vunpack.c.l.b16 %v119
    %v381 = vunpack.c.l.b16 %v120
    %v382 = vunpack.c.l.b16 %v121
    %v383 = vunpack.c.l.b16 %v122
    %v384 = vunpack.c.l.b16 %v123
    %v385 = vunpack.c.l.b16 %v124
    %v386 = vunpack.c.l.b16 %v125
    %v387 = vunpack.c.l.b16 %v126
    %v388 = vunpack.c.l.b16 %v127
    %v389 = vunpack.c.l.b16 %v128
    %v390 = vunpack.c.l.b16 %v129
    %v391 = vunpack.c.l.b16 %v130
    %v392 = vunpack.c.l.b16 %v131
    %v393 = vunpack.c.l.b16 %v132
    %v394 = vunpack.c.l.b16 %v133
    %v395 = vunpack.c.l.b16 %v134
    %v396 = vunpack.c.l.b16 %v135
    %v397 = vunpack.c.l.b16 %v136
    %v398 = vunpack.c.l.b16 %v137
    %v399 = vunpack.c.l.b16 %v138
    %v400 = vunpack.c.l.b16 %v139
    %v401 = vunpack.c.l.b16 %v140
    %v402 = vunpack.c.l.b16 %v141
    %v403 = vunpack.c.l.b16 %v142
    %v404 = vunpack.c.l.b16 %v143
    %v405 = vunpack.c.l.b16 %v144
    %v406 = vunpack.c.l.b16 %v145
    %v407 = vunpack.c.l.b16 %v146
    %v408 = vunpack.c.l.b16 %v147
    %v409 = vunpack.c.l.b16 %v148
    %v410 = vunpack.c.l.b16 %v149
    %v411 = vunpack.c.l.b16 %v150
    %v412 = vunpack.c.l.b16 %v151
    %v413 = vunpack.c.l.b16 %v152
    %v414 = vunpack.c.l.b16 %v153
    %v415 = vunpack.c.l.b16 %v154
    %v416 = vunpack.c.l.b16 %v155
    %v417 = vunpack.c.l.b16 %v156
    %v418 = vunpack.c.l.b16 %v157
    %v419 = vunpack.c.l.b16 %v158
    %v420 = vunpack.c.l.b16 %v159
    %v421 = vunpack.c.l.b16 %v160
    %v422 = vunpack.c.l.b16 %v161
    %v423 = vunpack.c.l.b16 %v162
    %v424 = vunpack.c.l.b16 %v163
    %v425 = vunpack.c.l.b16 %v164
    %v426 = vunpack.c.l.b16 %v165
    %v427 = vunpack.c.l.b16 %v166
    %v428 = vunpack.c.l.b16 %v167
    %v429 = vunpack.c.l.b16 %v168
    %v430 = vunpack.c.l.b16 %v169
    %v431 = vunpack.c.l.b16 %v170
    %v432 = vunpack.c.l.b16 %v171
    %v433 = vunpack.c.l.b16 %v172
    %v434 = vunpack.c.l.b16 %v173
    %v435 = vunpack.c.l.b16 %v174
    %v436 = vunpack.c.l.b16 %v175
    %v437 = vpack.c.b16 %v310, %v309
    %v438 = vpack.c.b16 %v312, %v311
    %v439 = vpack.c.b16 %v314, %v313
    %v440 = vpack.c.b16 %v316, %v315
    %v441 = vpack.c.b16 %v318, %v317
    %v442 = vpack.c.b16 %v320, %v319
    %v443 = vpack.c.b16 %v322, %v321
    %v444 = vpack.c.b16 %v324, %v323
    %v445 = vpack.c.b16 %v326, %v325
    %v446 = vpack.c.b16 %v328, %v327
    %v447 = vpack.c.b16 %v330, %v329
    %v448 = vpack.c.b16 %v332, %v331
    %v449 = vpack.c.b16 %v334, %v333
    %v450 = vpack.c.b16 %v336, %v335
    %v451 = vpack.c.b16 %v338, %v337
    %v452 = vpack.c.b16 %v340, %v339
    %v453 = vpack.c.b16 %v342, %v341
    %v454 = vpack.c.b16 %v344, %v343
    %v455 = vpack.c.b16 %v346, %v345
    %v456 = vpack.c.b16 %v348, %v347
    %v457 = vpack.c.b16 %v350, %v349
    %v458 = vpack.c.b16 %v352, %v351
    %v459 = vpack.c.b16 %v354, %v353
    %v460 = vpack.c.b16 %v356, %v355
    %v461 = vpack.c.b16 %v358, %v357
    %v462 = vpack.c.b16 %v360, %v359
    %v463 = vpack.c.b16 %v362, %v361
    %v464 = vpack.c.b16 %v364, %v363
    %v465 = vpack.c.b16 %v366, %v365
    %v466 = vpack.c.b16 %v368, %v367
    %v467 = vpack.c.b16 %v370, %v369
    %v468 = vpack.c.b16 %v372, %v371
    %v469 = vpack.c.b16 %v374, %v373
    %v470 = vpack.c.b16 %v376, %v375
    %v471 = vpack.c.b16 %v378, %v377
    %v472 = vpack.c.b16 %v380, %v379
    %v473 = vpack.c.b16 %v382, %v381
    %v474 = vpack.c.b16 %v384, %v383
    %v475 = vpack.c.b16 %v386, %v385
    %v476 = vpack.c.b16 %v388, %v387
    %v477 = vpack.c.b16 %v390, %v389
    %v478 = vpack.c.b16 %v392, %v391
    %v479 = vpack.c.b16 %v394, %v393
    %v480 = vpack.c.b16 %v396, %v395
    %v481 = vpack.c.b16 %v398, %v397
    %v482 = vpack.c.b16 %v400, %v399
    %v483 = vpack.c.b16 %v402, %v401
    %v484 = vpack.c.b16 %v404, %v403
    %v485 = vpack.c.b16 %v406, %v405
    %v486 = vpack.c.b16 %v408, %v407
    %v487 = vpack.c.b16 %v410, %v409
    %v488 = vpack.c.b16 %v412, %v411
    %v489 = vpack.c.b16 %v414, %v413
    %v490 = vpack.c.b16 %v416, %v415
    %v491 = vpack.c.b16 %v418, %v417
    %v492 = vpack.c.b16 %v420, %v419
    %v493 = vpack.c.b16 %v422, %v421
    %v494 = vpack.c.b16 %v424, %v423
    %v495 = vpack.c.b16 %v426, %v425
    %v496 = vpack.c.b16 %v428, %v427
    %v497 = vpack.c.b16 %v430, %v429
    %v498 = vpack.c.b16 %v432, %v431
    %v499 = vpack.c.b16 %v434, %v433
    %v500 = vpack.c.b16 %v436, %v435
    %565 = vmatprep.subr.bf16.mxu0 0
    %566 = vmatpush1.bf16.msra.mxu0 %v444
    %567 = vmatprep.subr.bf16.mxu0 0
    %568 = vmatpush1.bf16.msra.mxu0 %v443
    %569 = vmatprep.subr.bf16.mxu0 0
    %570 = vmatpush1.bf16.msra.mxu0 %v442
    %571 = vmatprep.subr.bf16.mxu0 0
    %572 = vmatpush1.bf16.msra.mxu0 %v441
    %573 = vmatprep.subr.bf16.mxu0 0
    %574 = vmatpush1.bf16.msra.mxu0 %v440
    %575 = vmatprep.subr.bf16.mxu0 0
    %576 = vmatpush1.bf16.msra.mxu0 %v439
    %577 = vmatprep.subr.bf16.mxu0 0
    %578 = vmatpush1.bf16.msra.mxu0 %v438
    %579 = vmatprep.subr.bf16.mxu0 0
    %580 = vmatpush1.bf16.msra.mxu0 %v437
    %581 = vmatprep.subr.bf16.mxu0 0
    %582 = vmatpush2.bf16.msra.mxu0 %v452
    %583 = vmatprep.subr.bf16.mxu0 0
    %584 = vmatpush2.bf16.msra.mxu0 %v451
    %585 = vmatprep.subr.bf16.mxu0 0
    %586 = vmatpush2.bf16.msra.mxu0 %v450
    %587 = vmatprep.subr.bf16.mxu0 0
    %588 = vmatpush2.bf16.msra.mxu0 %v449
    %589 = vmatprep.subr.bf16.mxu0 0
    %590 = vmatpush2.bf16.msra.mxu0 %v448
    %591 = vmatprep.subr.bf16.mxu0 0
    %592 = vmatpush2.bf16.msra.mxu0 %v447
    %593 = vmatprep.subr.bf16.mxu0 0
    %594 = vmatpush2.bf16.msra.mxu0 %v446
    %595 = vmatprep.subr.bf16.mxu0 0
    %596 = vmatpush2.bf16.msra.mxu0 %v445
    %597 = vmatprep.mubr.bf16.mxu0 %v41
    %598 = vmatmul.mubr.bf16.gmra.mxu0 %v40
    %v599 = vpop.f32.mrf.mxu0
    %v600 = vadd.f32 %v180, %v599
    %v601 = vpop.f32.mrf.mxu0
    %v602 = vpop.f32.mrf.mxu0
    %v603 = vpop.f32.mrf.mxu0
    %604 = vdwg.mxu0
    %605 = vmatprep.subr.bf16.mxu0 0
    %606 = vmatpush1.bf16.msra.mxu0 %v460
    %607 = vmatprep.subr.bf16.mxu0 0
    %608 = vmatpush1.bf16.msra.mxu0 %v459
    %609 = vmatprep.subr.bf16.mxu0 0
    %610 = vmatpush1.bf16.msra.mxu0 %v458
    %611 = vmatprep.subr.bf16.mxu0 0
    %612 = vmatpush1.bf16.msra.mxu0 %v457
    %613 = vmatprep.subr.bf16.mxu0 0
    %614 = vmatpush1.bf16.msra.mxu0 %v456
    %615 = vmatprep.subr.bf16.mxu0 0
    %616 = vmatpush1.bf16.msra.mxu0 %v455
    %617 = vmatprep.subr.bf16.mxu0 0
    %618 = vmatpush1.bf16.msra.mxu0 %v454
    %619 = vmatprep.subr.bf16.mxu0 0
    %620 = vmatpush1.bf16.msra.mxu0 %v453
    %621 = vmatprep.subr.bf16.mxu0 0
    %622 = vmatpush2.bf16.msra.mxu0 %v468
    %623 = vmatprep.subr.bf16.mxu0 0
    %624 = vmatpush2.bf16.msra.mxu0 %v467
    %625 = vmatprep.subr.bf16.mxu0 0
    %626 = vmatpush2.bf16.msra.mxu0 %v466
    %627 = vmatprep.subr.bf16.mxu0 0
    %628 = vmatpush2.bf16.msra.mxu0 %v465
    %629 = vmatprep.subr.bf16.mxu0 0
    %630 = vmatpush2.bf16.msra.mxu0 %v464
    %631 = vmatprep.subr.bf16.mxu0 0
    %632 = vmatpush2.bf16.msra.mxu0 %v463
    %633 = vmatprep.subr.bf16.mxu0 0
    %634 = vmatpush2.bf16.msra.mxu0 %v462
    %635 = vmatprep.subr.bf16.mxu0 0
    %636 = vmatpush2.bf16.msra.mxu0 %v461
    %637 = vmatprep.mubr.bf16.mxu0 %v43
    %638 = vmatmul.mubr.bf16.gmra.mxu0 %v42
    %v639 = vpop.f32.mrf.mxu0
    %v640 = vadd.f32 %v600, %v639
    %v641 = vpop.f32.mrf.mxu0
    %v642 = vpop.f32.mrf.mxu0
    %v643 = vpop.f32.mrf.mxu0
    %644 = vdwg.mxu0
    %645 = vmatprep.subr.bf16.mxu0 0
    %646 = vmatpush1.bf16.msra.mxu0 %v476
    %647 = vmatprep.subr.bf16.mxu0 0
    %648 = vmatpush1.bf16.msra.mxu0 %v475
    %649 = vmatprep.subr.bf16.mxu0 0
    %650 = vmatpush1.bf16.msra.mxu0 %v474
    %651 = vmatprep.subr.bf16.mxu0 0
    %652 = vmatpush1.bf16.msra.mxu0 %v473
    %653 = vmatprep.subr.bf16.mxu0 0
    %654 = vmatpush1.bf16.msra.mxu0 %v472
    %655 = vmatprep.subr.bf16.mxu0 0
    %656 = vmatpush1.bf16.msra.mxu0 %v471
    %657 = vmatprep.subr.bf16.mxu0 0
    %658 = vmatpush1.bf16.msra.mxu0 %v470
    %659 = vmatprep.subr.bf16.mxu0 0
    %660 = vmatpush1.bf16.msra.mxu0 %v469
    %661 = vmatprep.subr.bf16.mxu0 0
    %662 = vmatpush2.bf16.msra.mxu0 %v484
    %663 = vmatprep.subr.bf16.mxu0 0
    %664 = vmatpush2.bf16.msra.mxu0 %v483
    %665 = vmatprep.subr.bf16.mxu0 0
    %666 = vmatpush2.bf16.msra.mxu0 %v482
    %667 = vmatprep.subr.bf16.mxu0 0
    %668 = vmatpush2.bf16.msra.mxu0 %v481
    %669 = vmatprep.subr.bf16.mxu0 0
    %670 = vmatpush2.bf16.msra.mxu0 %v480
    %671 = vmatprep.subr.bf16.mxu0 0
    %672 = vmatpush2.bf16.msra.mxu0 %v479
    %673 = vmatprep.subr.bf16.mxu0 0
    %674 = vmatpush2.bf16.msra.mxu0 %v478
    %675 = vmatprep.subr.bf16.mxu0 0
    %676 = vmatpush2.bf16.msra.mxu0 %v477
    %677 = vmatprep.mubr.bf16.mxu0 %v45
    %678 = vmatmul.mubr.bf16.gmra.mxu0 %v44
    %v679 = vpop.f32.mrf.mxu0
    %v680 = vadd.f32 %v640, %v679
    %v681 = vpop.f32.mrf.mxu0
    %v682 = vpop.f32.mrf.mxu0
    %v683 = vpop.f32.mrf.mxu0
    %684 = vdwg.mxu0
    %685 = vmatprep.subr.bf16.mxu0 0
    %686 = vmatpush1.bf16.msra.mxu0 %v492
    %687 = vmatprep.subr.bf16.mxu0 0
    %688 = vmatpush1.bf16.msra.mxu0 %v491
    %689 = vmatprep.subr.bf16.mxu0 0
    %690 = vmatpush1.bf16.msra.mxu0 %v490
    %691 = vmatprep.subr.bf16.mxu0 0
    %692 = vmatpush1.bf16.msra.mxu0 %v489
    %693 = vmatprep.subr.bf16.mxu0 0
    %694 = vmatpush1.bf16.msra.mxu0 %v488
    %695 = vmatprep.subr.bf16.mxu0 0
    %696 = vmatpush1.bf16.msra.mxu0 %v487
    %697 = vmatprep.subr.bf16.mxu0 0
    %698 = vmatpush1.bf16.msra.mxu0 %v486
    %699 = vmatprep.subr.bf16.mxu0 0
    %700 = vmatpush1.bf16.msra.mxu0 %v485
    %701 = vmatprep.subr.bf16.mxu0 0
    %702 = vmatpush2.bf16.msra.mxu0 %v500
    %703 = vmatprep.subr.bf16.mxu0 0
    %704 = vmatpush2.bf16.msra.mxu0 %v499
    %705 = vmatprep.subr.bf16.mxu0 0
    %706 = vmatpush2.bf16.msra.mxu0 %v498
    %707 = vmatprep.subr.bf16.mxu0 0
    %708 = vmatpush2.bf16.msra.mxu0 %v497
    %709 = vmatprep.subr.bf16.mxu0 0
    %710 = vmatpush2.bf16.msra.mxu0 %v496
    %711 = vmatprep.subr.bf16.mxu0 0
    %712 = vmatpush2.bf16.msra.mxu0 %v495
    %713 = vmatprep.subr.bf16.mxu0 0
    %714 = vmatpush2.bf16.msra.mxu0 %v494
    %715 = vmatprep.subr.bf16.mxu0 0
    %716 = vmatpush2.bf16.msra.mxu0 %v493
    %717 = vmatprep.mubr.bf16.mxu0 %v47
    %718 = vmatmul.mubr.bf16.gmra.mxu0 %v46
    %v719 = vpop.f32.mrf.mxu0
    %v720 = vadd.f32 %v680, %v719
    %v721 = vpop.f32.mrf.mxu0
    %v722 = vpop.f32.mrf.mxu0
    %v723 = vpop.f32.mrf.mxu0
    %724 = vdwg.mxu0
    %v725 = vmax.f32 %v720, 0.0
    %v726 = vpack.c.bf16 %v725, %v725
    %v727 = vld [vmem:[%s2] sm:$0xf]
    %v728 = vld [vmem:[%s2 + $0x4] sm:$0xf]
    %v729 = vld [vmem:[%s2 + $0x8] sm:$0xf]
    %v730 = vld [vmem:[%s2 + $0xc] sm:$0xf]
    %v731 = vld [vmem:[%s2 + $0x10] sm:$0xf]
    %v732 = vld [vmem:[%s2 + $0x14] sm:$0xf]
    %v733 = vld [vmem:[%s2 + $0x18] sm:$0xf]
    %v734 = vld [vmem:[%s2 + $0x1c] sm:$0xf]
    %v735 = vld [vmem:[%s2 + $0x20] sm:$0xf]
    %v736 = vld [vmem:[%s2 + $0x24] sm:$0xf]
    %v737 = vld [vmem:[%s2 + $0x28] sm:$0xf]
    %v738 = vld [vmem:[%s2 + $0x2c] sm:$0xf]
    %v739 = vld [vmem:[%s2 + $0x30] sm:$0xf]
    %v740 = vld [vmem:[%s2 + $0x34] sm:$0xf]
    %v741 = vld [vmem:[%s2 + $0x38] sm:$0xf]
    %v742 = vld [vmem:[%s2 + $0x3c] sm:$0xf]
    %v743 = vld [vmem:[%s3 + $0x1] sm:$0x1]
    %v744 = vlaneseq
    %v745 = vshrl.u32 %v744, 7
    %v746 = vsub.s32 0, %v745
    %v747 = vrot.slane %v743, %v746
    %v764 = vunpack.c.l.b16 %v727
    %v765 = vunpack.c.l.b16 %v728
    %v766 = vunpack.c.l.b16 %v729
    %v767 = vunpack.c.l.b16 %v730
    %v768 = vunpack.c.l.b16 %v731
    %v769 = vunpack.c.l.b16 %v732
    %v770 = vunpack.c.l.b16 %v733
    %v771 = vunpack.c.l.b16 %v734
    %v772 = vunpack.c.l.b16 %v735
    %v773 = vunpack.c.l.b16 %v736
    %v774 = vunpack.c.l.b16 %v737
    %v775 = vunpack.c.l.b16 %v738
    %v776 = vunpack.c.l.b16 %v739
    %v777 = vunpack.c.l.b16 %v740
    %v778 = vunpack.c.l.b16 %v741
    %v779 = vunpack.c.l.b16 %v742
    %v780 = vpack.c.b16 %v765, %v764
    %v781 = vpack.c.b16 %v767, %v766
    %v782 = vpack.c.b16 %v769, %v768
    %v783 = vpack.c.b16 %v771, %v770
    %v784 = vpack.c.b16 %v773, %v772
    %v785 = vpack.c.b16 %v775, %v774
    %v786 = vpack.c.b16 %v777, %v776
    %v787 = vpack.c.b16 %v779, %v778
    %796 = vmatprep.subr.bf16.mxu0 0
    %797 = vmatpush1.bf16.msra.mxu0 %v787
    %798 = vmatprep.subr.bf16.mxu0 0
    %799 = vmatpush1.bf16.msra.mxu0 %v786
    %800 = vmatprep.subr.bf16.mxu0 0
    %801 = vmatpush1.bf16.msra.mxu0 %v785
    %802 = vmatprep.subr.bf16.mxu0 0
    %803 = vmatpush1.bf16.msra.mxu0 %v784
    %804 = vmatprep.subr.bf16.mxu0 0
    %805 = vmatpush1.bf16.msra.mxu0 %v783
    %806 = vmatprep.subr.bf16.mxu0 0
    %807 = vmatpush1.bf16.msra.mxu0 %v782
    %808 = vmatprep.subr.bf16.mxu0 0
    %809 = vmatpush1.bf16.msra.mxu0 %v781
    %810 = vmatprep.subr.bf16.mxu0 0
    %811 = vmatpush1.bf16.msra.mxu0 %v780
    %812 = vmatprep.subr.bf16.mxu0 0
    %813 = vmatpush2.bf16.msra.mxu0 0
    %814 = vmatprep.subr.bf16.mxu0 0
    %815 = vmatpush2.bf16.msra.mxu0 0
    %816 = vmatprep.subr.bf16.mxu0 0
    %817 = vmatpush2.bf16.msra.mxu0 0
    %818 = vmatprep.subr.bf16.mxu0 0
    %819 = vmatpush2.bf16.msra.mxu0 0
    %820 = vmatprep.subr.bf16.mxu0 0
    %821 = vmatpush2.bf16.msra.mxu0 0
    %822 = vmatprep.subr.bf16.mxu0 0
    %823 = vmatpush2.bf16.msra.mxu0 0
    %824 = vmatprep.subr.bf16.mxu0 0
    %825 = vmatpush2.bf16.msra.mxu0 0
    %826 = vmatprep.subr.bf16.mxu0 0
    %827 = vmatpush2.bf16.msra.mxu0 0
    %828 = vmatprep.mubr.bf16.mxu0 0
    %829 = vmatmul.mubr.bf16.gmra.mxu0 %v726
    %v830 = vpop.f32.mrf.mxu0
    %v831 = vadd.f32 %v747, %v830
    %v832 = vpop.f32.mrf.mxu0
    %v833 = vpop.f32.mrf.mxu0
    %v834 = vpop.f32.mrf.mxu0
    %835 = vdwg.mxu0
    %vm836 = vcmp.gt.f32.partialorder %v831, 0.0
    %v837 = vmul.f32 %v831, 0.01
    %v838 = vsel %vm836, %v831, %v837
    %v839 = vpack.c.bf16 %v838, %v838
    %s840 = scalar_lea.vmem %s2, 64
    %v841 = vld [vmem:[%s840] sm:$0xf]
    %v842 = vld [vmem:[%s840 + $0x4] sm:$0xf]
    %v843 = vld [vmem:[%s840 + $0x8] sm:$0xf]
    %v844 = vld [vmem:[%s840 + $0xc] sm:$0xf]
    %v845 = vld [vmem:[%s840 + $0x10] sm:$0xf]
    %v846 = vld [vmem:[%s840 + $0x14] sm:$0xf]
    %v847 = vld [vmem:[%s840 + $0x18] sm:$0xf]
    %v848 = vld [vmem:[%s840 + $0x1c] sm:$0xf]
    %v849 = vld [vmem:[%s840 + $0x20] sm:$0xf]
    %v850 = vld [vmem:[%s840 + $0x24] sm:$0xf]
    %v851 = vld [vmem:[%s840 + $0x28] sm:$0xf]
    %v852 = vld [vmem:[%s840 + $0x2c] sm:$0xf]
    %v853 = vld [vmem:[%s840 + $0x30] sm:$0xf]
    %v854 = vld [vmem:[%s840 + $0x34] sm:$0xf]
    %v855 = vld [vmem:[%s840 + $0x38] sm:$0xf]
    %v856 = vld [vmem:[%s840 + $0x3c] sm:$0xf]
    %v857 = vld [vmem:[%s3 + $0x2] sm:$0x1]
    %v858 = vlaneseq
    %v859 = vshrl.u32 %v858, 7
    %v860 = vsub.s32 0, %v859
    %v861 = vrot.slane %v857, %v860
    %v878 = vunpack.c.l.b16 %v841
    %v879 = vunpack.c.l.b16 %v842
    %v880 = vunpack.c.l.b16 %v843
    %v881 = vunpack.c.l.b16 %v844
    %v882 = vunpack.c.l.b16 %v845
    %v883 = vunpack.c.l.b16 %v846
    %v884 = vunpack.c.l.b16 %v847
    %v885 = vunpack.c.l.b16 %v848
    %v886 = vunpack.c.l.b16 %v849
    %v887 = vunpack.c.l.b16 %v850
    %v888 = vunpack.c.l.b16 %v851
    %v889 = vunpack.c.l.b16 %v852
    %v890 = vunpack.c.l.b16 %v853
    %v891 = vunpack.c.l.b16 %v854
    %v892 = vunpack.c.l.b16 %v855
    %v893 = vunpack.c.l.b16 %v856
    %v894 = vpack.c.b16 %v879, %v878
    %v895 = vpack.c.b16 %v881, %v880
    %v896 = vpack.c.b16 %v883, %v882
    %v897 = vpack.c.b16 %v885, %v884
    %v898 = vpack.c.b16 %v887, %v886
    %v899 = vpack.c.b16 %v889, %v888
    %v900 = vpack.c.b16 %v891, %v890
    %v901 = vpack.c.b16 %v893, %v892
    %910 = vmatprep.subr.bf16.mxu0 0
    %911 = vmatpush1.bf16.msra.mxu0 %v901
    %912 = vmatprep.subr.bf16.mxu0 0
    %913 = vmatpush1.bf16.msra.mxu0 %v900
    %914 = vmatprep.subr.bf16.mxu0 0
    %915 = vmatpush1.bf16.msra.mxu0 %v899
    %916 = vmatprep.subr.bf16.mxu0 0
    %917 = vmatpush1.bf16.msra.mxu0 %v898
    %918 = vmatprep.subr.bf16.mxu0 0
    %919 = vmatpush1.bf16.msra.mxu0 %v897
    %920 = vmatprep.subr.bf16.mxu0 0
    %921 = vmatpush1.bf16.msra.mxu0 %v896
    %922 = vmatprep.subr.bf16.mxu0 0
    %923 = vmatpush1.bf16.msra.mxu0 %v895
    %924 = vmatprep.subr.bf16.mxu0 0
    %925 = vmatpush1.bf16.msra.mxu0 %v894
    %926 = vmatprep.subr.bf16.mxu0 0
    %927 = vmatpush2.bf16.msra.mxu0 0
    %928 = vmatprep.subr.bf16.mxu0 0
    %929 = vmatpush2.bf16.msra.mxu0 0
    %930 = vmatprep.subr.bf16.mxu0 0
    %931 = vmatpush2.bf16.msra.mxu0 0
    %932 = vmatprep.subr.bf16.mxu0 0
    %933 = vmatpush2.bf16.msra.mxu0 0
    %934 = vmatprep.subr.bf16.mxu0 0
    %935 = vmatpush2.bf16.msra.mxu0 0
    %936 = vmatprep.subr.bf16.mxu0 0
    %937 = vmatpush2.bf16.msra.mxu0 0
    %938 = vmatprep.subr.bf16.mxu0 0
    %939 = vmatpush2.bf16.msra.mxu0 0
    %940 = vmatprep.subr.bf16.mxu0 0
    %941 = vmatpush2.bf16.msra.mxu0 0
    %942 = vmatprep.mubr.bf16.mxu0 0
    %943 = vmatmul.mubr.bf16.gmra.mxu0 %v839
    %v944 = vpop.f32.mrf.mxu0
    %v945 = vadd.f32 %v861, %v944
    %v946 = vpop.f32.mrf.mxu0
    %v947 = vpop.f32.mrf.mxu0
    %v948 = vpop.f32.mrf.mxu0
    %949 = vdwg.mxu0
    %950 = vst [vmem:[%s4] sm:$0xff] %v945
    // Predicated region
    $region22: #{forward.1} parent=1 // pred_check
      _
    $region23: #{forward.1} parent=1 // pred_check_branch
      %952 = sbr.rel (0) target = $region25
    $region24: #{forward.1} parent=1 // pred_region
      _
    $region25: #{forward.1} parent=1 // pred_fallthru
      _
    // Predicated region
    $region26: #{forward.1} parent=1 // pred_check
      _
    $region27: #{forward.1} parent=1 // pred_check_branch
      %954 = sbr.rel (0) target = $region29
    $region28: #{forward.1} parent=1 // pred_region
      _
    $region29: #{forward.1} parent=1 // pred_fallthru
      _
    %955 = vsyncpa [#allocation3], 1

</llo_original>
